<compile_context>
chip_gen: v6e
topology: v6e:2x2x1
jax: 0.10.0
libtpu: 0.0.40
codegen_flags: <defaults>
</compile_context>

<pallas_src>
import functools

import jax
import jax.numpy as jnp
import numpy as np
from jax.experimental import pallas as pl
from jax.experimental.pallas import tpu as pltpu

ALPHA = 0.3
BETA = 0.7
GAMMA = 0.75
EPS = 1e-07

# Tile sizing budget (fits comfortably inside every generation's default scoped
# VMEM, incl. v7x's 64 MiB physical) and the explicit scoped limit we request.
_VMEM_BUDGET_BYTES = 16 * 1024 * 1024
_VMEM_LIMIT_BYTES = 32 * 1024 * 1024


def _focal_tversky_partials_kernel(logits_ref, labels_ref, out_ref, *,
                                   masked, approx_recip):
    """One (batch, outer-chunk, inner-tile) grid step.

    Blocks: logits [1, C, TS, 128] (channel axis leading / vreg-batched, spatial
    fills sublanes+lanes), labels [1, 1, TS, 128] integer.  Output block
    [1, 1, 3, C, 128] is a resident lane-dense accumulator over the inner axis.
    """
    si = pl.program_id(2)

    # Zero this (batch, chunk)'s resident accumulator at the first inner tile.
    @pl.when(si == 0)
    def _():
        out_ref[...] = jnp.zeros_like(out_ref)

    x = logits_ref[0].astype(jnp.float32)            # [C, TS, 128] cast in-kernel
    labels = labels_ref[0, 0].astype(jnp.int32)      # [TS, 128]
    num_classes = x.shape[0]

    # Channel softmax: reductions over the *leading* axis are elementwise VPU
    # combines of C full-vreg slabs; normalization is one EUP reciprocal per
    # pixel plus a broadcast multiply.
    m = jnp.max(x, axis=0, keepdims=True)            # [1, TS, 128]
    e = jnp.exp(x - m)                               # EUP
    z = jnp.sum(e, axis=0, keepdims=True)            # [1, TS, 128]
    p = e * pl.reciprocal(z, approx=approx_recip)    # [C, TS, 128]

    # Per-class membership: a leading-axis iota is a per-slab constant, so this
    # is one VPU compare per (class, pixel); no materialized f32 one-hot.
    cls = jax.lax.broadcasted_iota(jnp.int32, x.shape, 0)
    hit = cls == labels[None]                        # [C, TS, 128] bool

    # Per-tile partial sums, reduced over the sublane-chunk axis to lane-dense
    # [C, 128] slabs (VPU adds across vregs, final 8->1 on the idle XLU).
    # fps/fns are recovered algebraically in the wrapper.
    inter = jnp.sum(jnp.where(hit, p, 0.0), axis=1)   # [C, 128] intersection
    cnt = jnp.sum(jnp.where(hit, 1.0, 0.0), axis=1)   # [C, 128] per-class pixels
    if masked:
        # Padded pixels carry the sentinel label `num_classes`: they never hit a
        # class (inter/cnt already safe), but their softmax mass must also be
        # kept out of sum_p or fps would be polluted.
        p = jnp.where((labels < num_classes)[None], p, 0.0)
    sum_p = jnp.sum(p, axis=1)                        # [C, 128] prob. mass

    out_ref[0, 0, 0] += inter
    out_ref[0, 0, 1] += sum_p
    out_ref[0, 0, 2] += cnt


def _pick_outer_split(n_tiles, batch, target=8):
    """Split spatial tiles into an outer 'parallel' axis so batch*outer gives the
    megacore scheduler enough independent work when the batch is small."""
    if n_tiles <= 1 or batch >= target:
        return 1
    want = -(-target // batch)
    so = 1
    for d in range(1, min(want, n_tiles) + 1):
        if n_tiles % d == 0:
            so = d
    return so


def _plan_tiling(P, batch, C, logit_itemsize, label_itemsize, max_tile_pixels):
    """Pick (TS, SO, SI, padded pixel count).

    The spatial axis is laid out as [S, 128]; a tile is TS sublane-chunks
    (TS * 128 pixels).  TS must be a multiple of 8 or the full extent; if no
    suitable divisor of S exists, S is padded (padding is masked in-kernel).
    """
    p128 = -(-P // 128) * 128
    S = p128 // 128

    # Per-TS-unit VMEM estimate: double-buffered input blocks plus ~6 live f32
    # [C, TS, 128] temporaries (x, e, p, compare/select results) plus labels.
    per_ts = (C * 128 * (2 * logit_itemsize + 6 * 4)
              + 128 * (2 * label_itemsize + 3 * 4))
    ts_cap = max(8, min(max_tile_pixels // 128, _VMEM_BUDGET_BYTES // per_ts))

    # With a single batch element, force >= 2 spatial tiles so the outer
    # 'parallel' chunk axis can keep a second TensorCore (v7x) busy.
    if batch == 1 and S >= 16:
        ts_cap = min(ts_cap, max(8, ((S // 2) // 8) * 8))

    if S <= ts_cap:
        ts, s_pad = S, S                      # single full-extent spatial tile
    else:
        ts = None
        for cand in range(8, (min(S, ts_cap) // 8) * 8 + 1, 8):
            if S % cand == 0:                 # divisor-flexible (any multiple of 8)
                ts = cand
        if ts is not None:
            s_pad = S
        else:
            ts = max(8, (ts_cap // 8) * 8)    # no clean divisor: pad S up to TS
            s_pad = -(-S // ts) * ts

    n_tiles = s_pad // ts
    so = _pick_outer_split(n_tiles, batch)
    return ts, so, n_tiles // so, s_pad * 128


def focal_tversky_loss(logits, targets, *, max_tile_pixels=131072,
                       approx_reciprocal=True):
    """Focal Tversky loss (multi-class, 2-D).

    logits:  [B, C, H, W], any float dtype (cast to f32 in-kernel).
    targets: [B, 1, H, W] or [B, H, W], any integer dtype (passed through
             un-widened; compared in-kernel).
    """
    if logits.ndim != 4:
        # TODO(synk): >4-D volumetric (One_Hot) path of tversky_loss not implemented.
        raise NotImplementedError("only the 4-D [B, C, H, W] path is implemented")
    B, C, H, W = logits.shape
    if C == 1:
        # TODO(synk): C == 1 sigmoid path of tversky_loss not implemented.
        raise NotImplementedError("C == 1 sigmoid path not implemented")
    P = H * W

    ts, n_so, n_si, p_pad = _plan_tiling(
        P, B, C, logits.dtype.itemsize, targets.dtype.itemsize, max_tile_pixels)
    masked = p_pad != P

    logits3 = logits.reshape(B, C, P)        # layout-preserving reshape, no copy
    labels3 = targets.reshape(B, 1, P)       # original (possibly narrow) int dtype
    if masked:
        pad = p_pad - P
        logits3 = jnp.pad(logits3, ((0, 0), (0, 0), (0, pad)))
        labels3 = jnp.pad(labels3, ((0, 0), (0, 0), (0, pad)),
                          constant_values=C)  # sentinel: never matches a class
    s_pad = p_pad // 128
    logits4 = logits3.reshape(B, C, s_pad, 128)   # spatial fills sublanes + lanes
    labels4 = labels3.reshape(B, 1, s_pad, 128)

    kernel = functools.partial(_focal_tversky_partials_kernel,
                               masked=masked, approx_recip=approx_reciprocal)
    partials = pl.pallas_call(
        kernel,
        out_shape=jax.ShapeDtypeStruct((B, n_so, 3, C, 128), jnp.float32),
        grid_spec=pltpu.PrefetchScalarGridSpec(
            num_scalar_prefetch=0,
            grid=(B, n_so, n_si),
            in_specs=[
                pl.BlockSpec((1, C, ts, 128),
                             lambda b, o, i: (b, 0, o * n_si + i, 0)),
                pl.BlockSpec((1, 1, ts, 128),
                             lambda b, o, i: (b, 0, o * n_si + i, 0)),
            ],
            out_specs=pl.BlockSpec((1, 1, 3, C, 128),
                                   lambda b, o, i: (b, o, 0, 0, 0)),
        ),
        compiler_params=pltpu.CompilerParams(
            dimension_semantics=("parallel", "parallel", "arbitrary"),
            vmem_limit_bytes=_VMEM_LIMIT_BYTES),
    )(logits4, labels4)

    # Tiny finalize in plain JAX: batch/chunk/lane sums, Tversky ratio, class
    # mean, focal power.  fps/fns recovered algebraically.
    sums = jnp.sum(partials, axis=(0, 1, 4))        # [3, C]
    inter, sum_p, cnt = sums[0], sums[1], sums[2]
    fps = sum_p - inter
    fns = cnt - inter
    tversky = jnp.mean(inter / (inter + ALPHA * fps + BETA * fns + EPS))
    return (1.0 - tversky) ** GAMMA


def _reference_loss(logits, targets):
    """Pure-JAX reference mirroring the PyTorch multi-class 4-D path."""
    C = logits.shape[1]
    probas = jax.nn.softmax(logits.astype(jnp.float32), axis=1)
    t = targets.reshape(targets.shape[0], *logits.shape[2:])
    one_hot = jax.nn.one_hot(t.astype(jnp.int32), C, dtype=jnp.float32)
    one_hot = jnp.moveaxis(one_hot, -1, 1)
    dims = (0, 2, 3)
    inter = jnp.sum(probas * one_hot, dims)
    fps = jnp.sum(probas * (1.0 - one_hot), dims)
    fns = jnp.sum((1.0 - probas) * one_hot, dims)
    tl = 1.0 - jnp.mean(inter / (inter + ALPHA * fps + BETA * fns + EPS))
    return tl ** GAMMA


if __name__ == "__main__":
    def check(name, lg, tg, rtol=5e-3, atol=1e-5, **kw):
        got = jax.block_until_ready(focal_tversky_loss(lg, tg, **kw))
        want = jax.block_until_ready(_reference_loss(lg, tg))
        assert np.allclose(np.asarray(got), np.asarray(want),
                           rtol=rtol, atol=atol), (
            f"{name}: kernel={got} ref={want}")

    key = jax.random.PRNGKey(0)
    k1, k2, k3, k4, k5, k6, k7, k8 = jax.random.split(key, 8)

    # 1) Base: B=2, C=4, 16x16, f32 logits, int32 labels (single spatial tile).
    logits = jax.random.normal(k1, (2, 4, 16, 16), dtype=jnp.float32)
    targets = jax.random.randint(k2, (2, 1, 16, 16), 0, 4, dtype=jnp.int32)
    #    a) exact reciprocal -> tight tolerance (validates everything else).
    check("base exact", logits, targets, rtol=2e-5, atol=1e-6,
          approx_reciprocal=False)
    #    b) default EUP approx reciprocal.
    check("base approx", logits, targets)

    # 2) bf16 logits: cast happens in-kernel (half the logits HBM traffic).
    check("bf16", logits.astype(jnp.bfloat16), targets)

    # 3) Spatially tiled + outer 'parallel' chunk split (64x64, forced tiny tiles).
    logits_l = jax.random.normal(k3, (2, 4, 64, 64), dtype=jnp.float32)
    targets_l = jax.random.randint(k4, (2, 1, 64, 64), 0, 4, dtype=jnp.int32)
    check("tiled", logits_l, targets_l, max_tile_pixels=1024)

    # 4) Accumulation across the inner 'arbitrary' axis (B=4 -> SO=2, SI=2).
    logits_a = jax.random.normal(k5, (4, 4, 64, 64), dtype=jnp.float32)
    targets_a = jax.random.randint(k6, (4, 1, 64, 64), 0, 4, dtype=jnp.int32)
    check("inner accumulation", logits_a, targets_a, max_tile_pixels=1024)

    # 5) Narrow label dtype passed straight through (int8) + bf16 logits.
    check("bf16 + int8 labels", logits_l.astype(jnp.bfloat16),
          targets_l.astype(jnp.int8))

    # 6) Non-128-divisible spatial extent: padded + masked in-kernel (exact).
    logits_p = jax.random.normal(k7, (2, 3, 20, 20), dtype=jnp.float32)
    targets_p = jax.random.randint(k8, (2, 1, 20, 20), 0, 3, dtype=jnp.int32)
    check("padded exact", logits_p, targets_p, rtol=2e-5, atol=1e-6,
          approx_reciprocal=False)
    check("padded approx", logits_p, targets_p)

    print("KERNEL_OK")
</pallas_src>

<mosaic_0001>
module attributes {stable_mosaic.version = 11 : i64} {
  func.func @_focal_tversky_partials_kernel(%arg0: i32, %arg1: i32, %arg2: i32, %arg3: memref<1x4x2x128xf32, #tpu.memory_space<vmem>>, %arg4: memref<1x1x2x128xi32, #tpu.memory_space<vmem>>, %arg5: memref<1x1x3x4x128xf32, #tpu.memory_space<vmem>>) attributes {dimension_semantics = [#tpu.dimension_semantics<parallel>, #tpu.dimension_semantics<parallel>, #tpu.dimension_semantics<arbitrary>], iteration_bounds = array<i64: 2, 1, 1>, scalar_prefetch = 0 : i64, scratch_operands = 0 : i64, tpu.core_type = #tpu.core_type<tc>, window_params = [{transform_indices = @transform_0, window_bounds = array<i64: 1, 4, 2, 128>}, {transform_indices = @transform_1, window_bounds = array<i64: 1, 1, 2, 128>}, {transform_indices = @transform_2, window_bounds = array<i64: 1, 1, 3, 4, 128>}]} {
    %c0_i32 = arith.constant 0 : i32
    %0 = arith.cmpi eq, %arg2, %c0_i32 : i32
    %1 = arith.extui %0 : i1 to i32
    %c0_i32_0 = arith.constant 0 : i32
    %2 = arith.cmpi ne, %1, %c0_i32_0 : i32
    scf.if %2 {
      %cst_43 = arith.constant 0.000000e+00 : f32
      %47 = vector.broadcast %cst_43 : f32 to vector<1x1x3x4x128xf32>
      %c0_44 = arith.constant 0 : index
      %c0_45 = arith.constant 0 : index
      %c0_46 = arith.constant 0 : index
      %c0_47 = arith.constant 0 : index
      %c0_48 = arith.constant 0 : index
      %48 = vector.load %arg5[%c0_44, %c0_45, %c0_46, %c0_47, %c0_48] : memref<1x1x3x4x128xf32, #tpu.memory_space<vmem>>, vector<1x1x3x4x128xf32>
      tpu.vector_store %arg5[%c0_44, %c0_45, %c0_46, %c0_47, %c0_48], %47 {strides = array<i32>} : memref<1x1x3x4x128xf32, #tpu.memory_space<vmem>>, vector<1x1x3x4x128xf32>,
    } else {
    }
    %c0 = arith.constant 0 : index
    %c0_1 = arith.constant 0 : index
    %c0_2 = arith.constant 0 : index
    %c0_3 = arith.constant 0 : index
    %3 = vector.load %arg3[%c0, %c0_1, %c0_2, %c0_3] : memref<1x4x2x128xf32, #tpu.memory_space<vmem>>, vector<1x4x2x128xf32>
    %4 = vector.shape_cast %3 : vector<1x4x2x128xf32> to vector<4x2x128xf32>
    %c0_4 = arith.constant 0 : index
    %c0_5 = arith.constant 0 : index
    %c0_6 = arith.constant 0 : index
    %c0_7 = arith.constant 0 : index
    %5 = vector.load %arg4[%c0_4, %c0_5, %c0_6, %c0_7] : memref<1x1x2x128xi32, #tpu.memory_space<vmem>>, vector<1x1x2x128xi32>
    %6 = vector.shape_cast %5 : vector<1x1x2x128xi32> to vector<2x128xi32>
    %cst = arith.constant dense<0xFF800000> : vector<2x128xf32>
    %7 = vector.multi_reduction <maximumf>, %4, %cst [0] : vector<4x2x128xf32> to vector<2x128xf32>
    %8 = vector.shape_cast %7 : vector<2x128xf32> to vector<1x2x128xf32>
    %9 = vector.broadcast %8 : vector<1x2x128xf32> to vector<4x2x128xf32>
    %10 = arith.subf %4, %9 : vector<4x2x128xf32>
    %11 = math.exp %10 : vector<4x2x128xf32>
    %cst_8 = arith.constant dense<0.000000e+00> : vector<2x128xf32>
    %12 = vector.multi_reduction <add>, %11, %cst_8 [0] : vector<4x2x128xf32> to vector<2x128xf32>
    %13 = vector.shape_cast %12 : vector<2x128xf32> to vector<1x2x128xf32>
    %14 = tpu.reciprocal %13 : vector<1x2x128xf32> -> vector<1x2x128xf32>
    %15 = vector.broadcast %14 : vector<1x2x128xf32> to vector<4x2x128xf32>
    %16 = arith.mulf %11, %15 : vector<4x2x128xf32>
    %17 = tpu.iota {dimensions = array<i32: 0>} : vector<4x2x128xi32>
    %18 = vector.shape_cast %6 : vector<2x128xi32> to vector<1x2x128xi32>
    %19 = vector.broadcast %18 : vector<1x2x128xi32> to vector<4x2x128xi32>
    %20 = arith.cmpi eq, %17, %19 : vector<4x2x128xi32>
    %cst_9 = arith.constant 0.000000e+00 : f32
    %21 = vector.broadcast %cst_9 : f32 to vector<4x2x128xf32>
    %22 = arith.select %20, %16, %21 : vector<4x2x128xi1>, vector<4x2x128xf32>
    %cst_10 = arith.constant dense<0.000000e+00> : vector<4x128xf32>
    %23 = vector.multi_reduction <add>, %22, %cst_10 [1] : vector<4x2x128xf32> to vector<4x128xf32>
    %cst_11 = arith.constant 1.000000e+00 : f32
    %cst_12 = arith.constant 0.000000e+00 : f32
    %24 = vector.broadcast %cst_11 : f32 to vector<4x2x128xf32>
    %25 = vector.broadcast %cst_12 : f32 to vector<4x2x128xf32>
    %26 = arith.select %20, %24, %25 : vector<4x2x128xi1>, vector<4x2x128xf32>
    %cst_13 = arith.constant dense<0.000000e+00> : vector<4x128xf32>
    %27 = vector.multi_reduction <add>, %26, %cst_13 [1] : vector<4x2x128xf32> to vector<4x128xf32>
    %cst_14 = arith.constant dense<0.000000e+00> : vector<4x128xf32>
    %28 = vector.multi_reduction <add>, %16, %cst_14 [1] : vector<4x2x128xf32> to vector<4x128xf32>
    %c0_15 = arith.constant 0 : index
    %c0_16 = arith.constant 0 : index
    %c0_17 = arith.constant 0 : index
    %c0_18 = arith.constant 0 : index
    %c0_19 = arith.constant 0 : index
    %29 = vector.load %arg5[%c0_15, %c0_16, %c0_17, %c0_18, %c0_19] : memref<1x1x3x4x128xf32, #tpu.memory_space<vmem>>, vector<1x1x1x4x128xf32>
    %30 = vector.shape_cast %29 : vector<1x1x1x4x128xf32> to vector<4x128xf32>
    %31 = arith.addf %30, %23 : vector<4x128xf32>
    %c0_20 = arith.constant 0 : index
    %c0_21 = arith.constant 0 : index
    %c0_22 = arith.constant 0 : index
    %c0_23 = arith.constant 0 : index
    %c0_24 = arith.constant 0 : index
    %32 = vector.load %arg5[%c0_20, %c0_21, %c0_22, %c0_23, %c0_24] : memref<1x1x3x4x128xf32, #tpu.memory_space<vmem>>, vector<1x1x1x4x128xf32>
    %33 = vector.shape_cast %32 : vector<1x1x1x4x128xf32> to vector<4x128xf32>
    %34 = vector.shape_cast %31 : vector<4x128xf32> to vector<1x1x1x4x128xf32>
    tpu.vector_store %arg5[%c0_20, %c0_21, %c0_22, %c0_23, %c0_24], %34 {strides = array<i32>} : memref<1x1x3x4x128xf32, #tpu.memory_space<vmem>>, vector<1x1x1x4x128xf32>,
    %c0_25 = arith.constant 0 : index
    %c0_26 = arith.constant 0 : index
    %c1 = arith.constant 1 : index
    %c0_27 = arith.constant 0 : index
    %c0_28 = arith.constant 0 : index
    %35 = vector.load %arg5[%c0_25, %c0_26, %c1, %c0_27, %c0_28] : memref<1x1x3x4x128xf32, #tpu.memory_space<vmem>>, vector<1x1x1x4x128xf32>
    %36 = vector.shape_cast %35 : vector<1x1x1x4x128xf32> to vector<4x128xf32>
    %37 = arith.addf %36, %28 : vector<4x128xf32>
    %c0_29 = arith.constant 0 : index
    %c0_30 = arith.constant 0 : index
    %c1_31 = arith.constant 1 : index
    %c0_32 = arith.constant 0 : index
    %c0_33 = arith.constant 0 : index
    %38 = vector.load %arg5[%c0_29, %c0_30, %c1_31, %c0_32, %c0_33] : memref<1x1x3x4x128xf32, #tpu.memory_space<vmem>>, vector<1x1x1x4x128xf32>
    %39 = vector.shape_cast %38 : vector<1x1x1x4x128xf32> to vector<4x128xf32>
    %40 = vector.shape_cast %37 : vector<4x128xf32> to vector<1x1x1x4x128xf32>
    tpu.vector_store %arg5[%c0_29, %c0_30, %c1_31, %c0_32, %c0_33], %40 {strides = array<i32>} : memref<1x1x3x4x128xf32, #tpu.memory_space<vmem>>, vector<1x1x1x4x128xf32>,
    %c0_34 = arith.constant 0 : index
    %c0_35 = arith.constant 0 : index
    %c2 = arith.constant 2 : index
    %c0_36 = arith.constant 0 : index
    %c0_37 = arith.constant 0 : index
    %41 = vector.load %arg5[%c0_34, %c0_35, %c2, %c0_36, %c0_37] : memref<1x1x3x4x128xf32, #tpu.memory_space<vmem>>, vector<1x1x1x4x128xf32>
    %42 = vector.shape_cast %41 : vector<1x1x1x4x128xf32> to vector<4x128xf32>
    %43 = arith.addf %42, %27 : vector<4x128xf32>
    %c0_38 = arith.constant 0 : index
    %c0_39 = arith.constant 0 : index
    %c2_40 = arith.constant 2 : index
    %c0_41 = arith.constant 0 : index
    %c0_42 = arith.constant 0 : index
    %44 = vector.load %arg5[%c0_38, %c0_39, %c2_40, %c0_41, %c0_42] : memref<1x1x3x4x128xf32, #tpu.memory_space<vmem>>, vector<1x1x1x4x128xf32>
    %45 = vector.shape_cast %44 : vector<1x1x1x4x128xf32> to vector<4x128xf32>
    %46 = vector.shape_cast %43 : vector<4x128xf32> to vector<1x1x1x4x128xf32>
    tpu.vector_store %arg5[%c0_38, %c0_39, %c2_40, %c0_41, %c0_42], %46 {strides = array<i32>} : memref<1x1x3x4x128xf32, #tpu.memory_space<vmem>>, vector<1x1x1x4x128xf32>,
    return
  }
  func.func @transform_0(%arg0: i32, %arg1: i32, %arg2: i32) -> (i32, i32, i32, i32) {
    %c1_i32 = arith.constant 1 : i32
    %0 = arith.muli %arg1, %c1_i32 : i32
    %1 = arith.addi %0, %arg2 : i32
    %c0_i32 = arith.constant 0 : i32
    %c0_i32_0 = arith.constant 0 : i32
    %c0_i32_1 = arith.constant 0 : i32
    return %arg0, %c0_i32, %1, %c0_i32_0 : i32, i32, i32, i32
  }
  func.func @transform_1(%arg0: i32, %arg1: i32, %arg2: i32) -> (i32, i32, i32, i32) {
    %c1_i32 = arith.constant 1 : i32
    %0 = arith.muli %arg1, %c1_i32 : i32
    %1 = arith.addi %0, %arg2 : i32
    %c0_i32 = arith.constant 0 : i32
    %c0_i32_0 = arith.constant 0 : i32
    %c0_i32_1 = arith.constant 0 : i32
    return %arg0, %c0_i32, %1, %c0_i32_0 : i32, i32, i32, i32
  }
  func.func @transform_2(%arg0: i32, %arg1: i32, %arg2: i32) -> (i32, i32, i32, i32, i32) {
    %c0_i32 = arith.constant 0 : i32
    %c0_i32_0 = arith.constant 0 : i32
    %c0_i32_1 = arith.constant 0 : i32
    %c0_i32_2 = arith.constant 0 : i32
    return %arg0, %arg1, %c0_i32, %c0_i32_0, %c0_i32_1 : i32, i32, i32, i32, i32
  }
}

</mosaic_0001>

<llo_original>
// kernel: tpu_custom_call.1
$region0: #{tpu_custom_call.1}
  #allocation0 [shape = 'u32[]', space=smem, size = 0x4, offset = 0x4, fixed_abs, tag = 'smem constant byte address 0x4 - core index']
  #allocation1 [shape = 'u32[144,128]{1,0:T(1,128)}', space=vmem, size = 0x12000, scoped, tag = 'internal scratch']
  %s0 = inlined_call_operand.hbm [shape: f32[2,4,2,128], index: 0, kind: input, shape index: {}]
  %s1 = inlined_call_operand.hbm [shape: s32[2,1,2,128], index: 1, kind: input, shape index: {}]
  %s2 = inlined_call_operand.hbm [shape: f32[2,1,3,4,128], index: 2, kind: output, shape index: {}]
  %s3 = sld [smem:[#allocation0]]
  $region53: #{tpu_custom_call.1} parent=0
    _
  %s5 = ssub.s32 1, %s3
  %s6 = scalar_select 0, %s5, %s3
  $region1: #{tpu_custom_call.1} parent=0
    #allocation2 [shape = 'u8[8192]{0}', space=vmem, size = 0x2000, scoped, tag = 'input window, operand 0']
    #allocation3 [shape = 's32[2]{0}', space=sflag, size = 0x8, scoped, tag = 'scoped memory for tpu_custom_call.1']
    #allocation4 [shape = 's32[2]{0}', space=sflag, size = 0x8, scoped, tag = 'scoped memory for tpu_custom_call.1']
    #allocation5 [shape = 'u8[2048]{0}', space=vmem, size = 0x800, scoped, tag = 'input window, operand 1']
    #allocation6 [shape = 's32[2]{0}', space=sflag, size = 0x8, scoped, tag = 'scoped memory for tpu_custom_call.1']
    #allocation7 [shape = 'u8[12288]{0}', space=vmem, size = 0x3000, scoped, tag = 'output window, operand 0']
    %7 = vsyncpa [#allocation3], 0
    %s8 = scalar_lea.sflag [#allocation3], 1
    %9 = vsyncpa %s8, 0
    %10 = vsyncpa [#allocation6], 0
    %s11 = scalar_lea.sflag [#allocation6], 1
    %12 = vsyncpa %s11, 0
    %13 = vsyncpa [#allocation4], 0
    %s14 = scalar_lea.sflag [#allocation4], 1
    %15 = vsyncpa %s14, 0
    loop: start=0, step=1, limit=4
    $region2: #{tpu_custom_call.1} parent=1 // loop_pre_header
      _
    $region3: #{tpu_custom_call.1} parent=1 // loop_header
      %s17 = sphi 0, %s21
      %p18 = scmp.ge.s32.totalorder %s17, 4
      %s24 = sphi 0, %s43
      %s25 = sphi 0, %s39
      %s26 = sphi 0, %s35
      %s27 = sphi 0, %s24
      %s28 = sphi 0, %s25
      %s29 = sphi 0, %s26
      %s30 = sphi 0, %s27
      %s31 = sphi 0, %s28
      %s32 = sphi 0, %s29
      %s50 = sphi 0, %s52
      %s53 = sphi 0, %s50
      %s54 = sphi 0, %s53
      %s70 = sphi 0, %s54
      %s80 = sphi 0, %s82
      %s83 = sphi 0, %s80
      %s84 = sphi 0, %s83
      %s100 = sphi 0, %s84
      %s108 = sphi 0, %s110
      %s111 = sphi 0, %s108
      %s112 = sphi 0, %s111
      %s128 = sphi 0, %s112
    $region4: #{tpu_custom_call.1} parent=1 // loop_header_branch
      %20 = sbr.rel (%p18) target = $region8
    $region5: #{tpu_custom_call.1} parent=1 // loop_body
      %s22 = ssub.s32 %s17, 1
      %s23 = ssub.s32 %s17, 2
      %s33 = sadd.s32 1, %s26
      %p34 = scmp.ge.s32.totalorder %s33, 1
      %s35 = scalar_select %p34, 0, %s33
      %s36 = sadd.s32 1, %s25
      %s37 = scalar_select %p34, %s36, %s25
      %p38 = scmp.ge.s32.totalorder %s37, 1
      %s39 = scalar_select %p38, 0, %s37
      %s40 = sadd.s32 1, %s24
      %s41 = scalar_select %p38, %s40, %s24
      %p42 = scmp.ge.s32.totalorder %s41, 2
      %s43 = scalar_select %p42, 0, %s41
      %s44 = sadd.s32 %s25, %s26
      %s45 = sadd.s32 %s39, %s35
      %s46 = ssub.s32 %s24, %s43
      %s47 = ssub.s32 %s44, %s45
      %s48 = sor.u32 %s46, %s47
      %p49 = scmp.eq.s32.totalorder %s48, 0
      %s51 = sadd.s32 %s50, 1
      %s52 = scalar_select %p49, %s50, %s51
      %p55 = pneg %p49
      %p56 = scmp.eq.s32.totalorder %s17, 1
      %p57 = por %p55, %p56
      %p58 = scmp.ne.s32.totalorder %s50, %s53
      %p59 = scmp.eq.s32.totalorder %s17, 0
      %p60 = por %p58, %p59
      %p61 = scmp.ne.s32.totalorder %s50, %s53
      %p62 = scmp.eq.s32.totalorder %s22, 1
      %p63 = por %p61, %p62
      %p64 = scmp.ne.s32.totalorder %s53, %s54
      %p65 = scmp.eq.s32.totalorder %s22, 0
      %p66 = por %p64, %p65
      %p67 = scmp.ne.s32.totalorder %s53, %s54
      %p68 = scmp.eq.s32.totalorder %s23, 1
      %p69 = por %p67, %p68
      %p71 = scmp.ne.s32.totalorder %s54, %s70
      %p72 = scmp.eq.s32.totalorder %s23, 0
      %p73 = por %p71, %p72
      %s74 = sadd.s32 %s25, %s26
      %s75 = sadd.s32 %s39, %s35
      %s76 = ssub.s32 %s24, %s43
      %s77 = ssub.s32 %s74, %s75
      %s78 = sor.u32 %s76, %s77
      %p79 = scmp.eq.s32.totalorder %s78, 0
      %s81 = sadd.s32 %s80, 1
      %s82 = scalar_select %p79, %s80, %s81
      %p85 = pneg %p79
      %p86 = scmp.eq.s32.totalorder %s17, 1
      %p87 = por %p85, %p86
      %p88 = scmp.ne.s32.totalorder %s80, %s83
      %p89 = scmp.eq.s32.totalorder %s17, 0
      %p90 = por %p88, %p89
      %p91 = scmp.ne.s32.totalorder %s80, %s83
      %p92 = scmp.eq.s32.totalorder %s22, 1
      %p93 = por %p91, %p92
      %p94 = scmp.ne.s32.totalorder %s83, %s84
      %p95 = scmp.eq.s32.totalorder %s22, 0
      %p96 = por %p94, %p95
      %p97 = scmp.ne.s32.totalorder %s83, %s84
      %p98 = scmp.eq.s32.totalorder %s23, 1
      %p99 = por %p97, %p98
      %p101 = scmp.ne.s32.totalorder %s84, %s100
      %p102 = scmp.eq.s32.totalorder %s23, 0
      %p103 = por %p101, %p102
      %s104 = ssub.s32 %s24, %s43
      %s105 = ssub.s32 %s25, %s39
      %s106 = sor.u32 %s104, %s105
      %p107 = scmp.eq.s32.totalorder %s106, 0
      %s109 = sadd.s32 %s108, 1
      %s110 = scalar_select %p107, %s108, %s109
      %p113 = pneg %p107
      %p114 = scmp.eq.s32.totalorder %s17, 1
      %p115 = por %p113, %p114
      %p116 = scmp.ne.s32.totalorder %s108, %s111
      %p117 = scmp.eq.s32.totalorder %s17, 0
      %p118 = por %p116, %p117
      %p119 = scmp.ne.s32.totalorder %s108, %s111
      %p120 = scmp.eq.s32.totalorder %s22, 1
      %p121 = por %p119, %p120
      %p122 = scmp.ne.s32.totalorder %s111, %s112
      %p123 = scmp.eq.s32.totalorder %s22, 0
      %p124 = por %p122, %p123
      %p125 = scmp.ne.s32.totalorder %s111, %s112
      %p126 = scmp.eq.s32.totalorder %s23, 1
      %p127 = por %p125, %p126
      %p129 = scmp.ne.s32.totalorder %s112, %s128
      %p130 = scmp.eq.s32.totalorder %s23, 0
      %p131 = por %p129, %p130
      %p132 = scmp.le.s32.totalorder 1, %s17
      %p133 = scmp.lt.s32.totalorder %s17, 3
      %p134 = pnand %p132, %p133
      %p135 = pneg %p134
      // Predicated region
      $region9: #{tpu_custom_call.1} parent=5 // pred_check
        _
      $region10: #{tpu_custom_call.1} parent=5 // pred_check_branch
        %137 = sbr.rel (%p134) target = $region12
      $region11: #{tpu_custom_call.1} parent=5 // pred_region
        %s138 = ssub.s32 %s17, 1
      $region12: #{tpu_custom_call.1} parent=5 // pred_fallthru
        _
      %p139 = scmp.lt.s32.totalorder %s17, 2
      // Predicated region
      $region13: #{tpu_custom_call.1} parent=5 // pred_check
        %p140 = pneg %p139
      $region14: #{tpu_custom_call.1} parent=5 // pred_check_branch
        %142 = sbr.rel (%p140) target = $region16
      $region15: #{tpu_custom_call.1} parent=5 // pred_region
        // Predicated region
        $region17: #{tpu_custom_call.1} parent=15 // pred_check
          %p143 = pneg %p60
        $region18: #{tpu_custom_call.1} parent=15 // pred_check_branch
          %145 = sbr.rel (%p143) target = $region20
        $region19: #{tpu_custom_call.1} parent=15 // pred_region
          %s146 = sand.u32 %s50, 1
          %s147 = scalar_lea.sflag [#allocation3], %s146
          %s148 = sand.u32 %s50, 1
          %s149 = smul.addr %s148, 8
          %s150 = scalar_lea.vmem [#allocation2], %s149
          %s151 = sadd.s32 %s25, %s26
          %s153 = ssub.s32 128, 128
          %154 = vsyncadd %s147, %s153
          %s155 = smul.addr %s24, 4
          %s156 = sadd.s32 %s151, %s155
          %s157 = smul.addr %s156, 32
          %s158 = scalar_lea.hbm %s0, %s157
          %s159 = sshll.u32 %s150, 4
          %s160 = int_to_ptr.vmem [resolvable:$true] %s159
          %165 = dma.hbm_to_vmem [thread:$0]  %s158, 128, %s160, %s147, 32, 32, 2
        $region20: #{tpu_custom_call.1} parent=15 // pred_fallthru
          _
        // Predicated region
        $region21: #{tpu_custom_call.1} parent=15 // pred_check
          %p166 = pneg %p90
        $region22: #{tpu_custom_call.1} parent=15 // pred_check_branch
          %168 = sbr.rel (%p166) target = $region24
        $region23: #{tpu_custom_call.1} parent=15 // pred_region
          %s169 = sand.u32 %s80, 1
          %s170 = scalar_lea.sflag [#allocation6], %s169
          %s171 = sand.u32 %s80, 1
          %s172 = smul.addr %s171, 2
          %s173 = scalar_lea.vmem [#allocation5], %s172
          %s174 = sadd.s32 %s25, %s26
          %s176 = ssub.s32 32, 32
          %177 = vsyncadd %s170, %s176
          %s178 = sadd.s32 %s174, %s24
          %s179 = smul.addr %s178, 32
          %s180 = scalar_lea.hbm %s1, %s179
          %s182 = sshll.u32 %s173, 4
          %s183 = int_to_ptr.vmem [resolvable:$true] %s182
          %185 = dma.hbm_to_vmem [thread:$0]  %s180, 32, %s183, %s170
        $region24: #{tpu_custom_call.1} parent=15 // pred_fallthru
          _
      $region16: #{tpu_custom_call.1} parent=5 // pred_fallthru
        _
      %p186 = scmp.le.s32.totalorder 1, %s17
      %p187 = scmp.lt.s32.totalorder %s17, 3
      %p188 = pnand %p186, %p187
      %p189 = pneg %p188
      // Predicated region
      $region25: #{tpu_custom_call.1} parent=5 // pred_check
        _
      $region26: #{tpu_custom_call.1} parent=5 // pred_check_branch
        %191 = sbr.rel (%p188) target = $region28
      $region27: #{tpu_custom_call.1} parent=5 // pred_region
        %s192 = ssub.s32 %s17, 1
        %s193 = sand.u32 %s53, 1
        %s194 = scalar_lea.sflag [#allocation3], %s193
        %s195 = sand.u32 %s53, 1
        %s196 = smul.addr %s195, 8
        %s197 = scalar_lea.vmem [#allocation2], %s196
        // Predicated region
        $region29: #{tpu_custom_call.1} parent=27 // pred_check
          %p198 = pneg %p66
        $region30: #{tpu_custom_call.1} parent=27 // pred_check_branch
          %200 = sbr.rel (%p198) target = $region32
        $region31: #{tpu_custom_call.1} parent=27 // pred_region
          %201 = dma.done %s194, 128
        $region32: #{tpu_custom_call.1} parent=27 // pred_fallthru
          _
        %s202 = sand.u32 %s83, 1
        %s203 = scalar_lea.sflag [#allocation6], %s202
        %s204 = sand.u32 %s83, 1
        %s205 = smul.addr %s204, 2
        %s206 = scalar_lea.vmem [#allocation5], %s205
        // Predicated region
        $region33: #{tpu_custom_call.1} parent=27 // pred_check
          %p207 = pneg %p96
        $region34: #{tpu_custom_call.1} parent=27 // pred_check_branch
          %209 = sbr.rel (%p207) target = $region36
        $region35: #{tpu_custom_call.1} parent=27 // pred_region
          %210 = dma.done %s203, 32
        $region36: #{tpu_custom_call.1} parent=27 // pred_fallthru
          _
        %s211 = sand.u32 %s53, 1
        %s212 = scalar_lea.sflag [#allocation3], %s211
        %s213 = sand.u32 %s53, 1
        %s214 = smul.addr %s213, 8
        %s215 = scalar_lea.vmem [#allocation2], %s214
        %p216 = pneg %p66
        %p217 = pneg %p63
        %s218 = sand.u32 %s83, 1
        %s219 = scalar_lea.sflag [#allocation6], %s218
        %s220 = sand.u32 %s83, 1
        %s221 = smul.addr %s220, 2
        %s222 = scalar_lea.vmem [#allocation5], %s221
        %p223 = pneg %p96
        %p224 = pneg %p93
        %p225 = pneg %p124
        %p226 = pneg %p121
        %s227 = sand.u32 %s111, 1
        %s228 = scalar_lea.sflag [#allocation4], %s227
        %s229 = sand.u32 %s111, 1
        %s230 = smul.addr %s229, 12
        %s231 = scalar_lea.vmem [#allocation7], %s230
        %s232 = sadd.s32 %s28, %s29
        %s233 = sadd.s32 %s28, %s29
        %p234 = scmp.eq.s32.totalorder %s29, 0
        // Predicated region
        $region37: #{tpu_custom_call.1} parent=27 // pred_check
          %p235 = pneg %p234
        $region38: #{tpu_custom_call.1} parent=27 // pred_check_branch
          %237 = sbr.rel (%p235) target = $region40
        $region39: #{tpu_custom_call.1} parent=27 // pred_region
          %238 = vst [vmem:[%s231] sm:$0xf] 0.0
          %239 = vst [vmem:[%s231 + $0x4] sm:$0xf] 0.0
          %240 = vst [vmem:[%s231 + $0x8] sm:$0xf] 0.0
        $region40: #{tpu_custom_call.1} parent=27 // pred_fallthru
          _
        %v241 = vld [vmem:[%s197] sm:$0x3]
        %v242 = vld [vmem:[%s197 + $0x2] sm:$0x3]
        %v243 = vld [vmem:[%s197 + $0x4] sm:$0x3]
        %v244 = vld [vmem:[%s197 + $0x6] sm:$0x3]
        %v245 = vld [vmem:[%s206] sm:$0x3]
        %vm246 = vcmask 1041408
        %v247 = vsel %vm246, %v241, -inf
        %v248 = vsel %vm246, %v242, -inf
        %v249 = vsel %vm246, %v243, -inf
        %v250 = vsel %vm246, %v244, -inf
        %v251 = vmax.f32 %v247, %v248
        %v252 = vmax.f32 %v249, %v250
        %v253 = vmax.f32 %v251, %v252
        %v254 = vsub.f32 %v241, %v253
        %v255 = vsub.f32 %v242, %v253
        %v256 = vsub.f32 %v243, %v253
        %v257 = vsub.f32 %v244, %v253
        %v258 = vmul.f32 %v254, 1.442695
        %v259 = vpow.pop %v258
        %v260 = vmul.f32 %v255, 1.442695
        %v261 = vpow.pop %v260
        %v262 = vmul.f32 %v256, 1.442695
        %v263 = vpow.pop %v262
        %v264 = vmul.f32 %v257, 1.442695
        %v265 = vpow.pop %v264
        %v266 = vsel %vm246, %v259, 0.0
        %v267 = vsel %vm246, %v261, 0.0
        %v268 = vadd.f32 %v266, %v267
        %v269 = vsel %vm246, %v263, 0.0
        %v270 = vadd.f32 %v268, %v269
        %v271 = vsel %vm246, %v265, 0.0
        %v272 = vadd.f32 %v270, %v271
        %v273 = vrcp.pop %v272
        %v274 = vmul.f32 %v259, %v273
        %v275 = vmul.f32 %v261, %v273
        %v276 = vmul.f32 %v263, %v273
        %v277 = vmul.f32 %v265, %v273
        %vm278 = vcmp.eq.s32.totalorder %v245, 0
        %vm279 = vcmp.eq.s32.totalorder %v245, 1
        %vm280 = vcmp.eq.s32.totalorder %v245, 2
        %vm281 = vcmp.eq.s32.totalorder %v245, 3
        %v282 = vsel %vm278, %v274, 0.0
        %v283 = vsel %vm279, %v275, 0.0
        %v284 = vsel %vm280, %v276, 0.0
        %v285 = vsel %vm281, %v277, 0.0
        %v286 = vsel %vm246, %v282, 0.0
        %v287 = vrot.slane %v286, 4
        %v288 = vadd.f32 %v286, %v287
        %v289 = vrot.slane %v288, 2
        %v290 = vadd.f32 %v288, %v289
        %v291 = vrot.slane %v290, 1
        %v292 = vadd.f32 %v290, %v291
        %v293 = vsel %vm246, %v283, 0.0
        %v294 = vrot.slane %v293, 4
        %v295 = vadd.f32 %v293, %v294
        %v296 = vrot.slane %v295, 2
        %v297 = vadd.f32 %v295, %v296
        %v298 = vrot.slane %v297, 1
        %v299 = vadd.f32 %v297, %v298
        %v300 = vsel %vm246, %v284, 0.0
        %v301 = vrot.slane %v300, 4
        %v302 = vadd.f32 %v300, %v301
        %v303 = vrot.slane %v302, 2
        %v304 = vadd.f32 %v302, %v303
        %v305 = vrot.slane %v304, 1
        %v306 = vadd.f32 %v304, %v305
        %v307 = vsel %vm246, %v285, 0.0
        %v308 = vrot.slane %v307, 4
        %v309 = vadd.f32 %v307, %v308
        %v310 = vrot.slane %v309, 2
        %v311 = vadd.f32 %v309, %v310
        %v312 = vrot.slane %v311, 1
        %v313 = vadd.f32 %v311, %v312
        %v314 = vsel %vm278, 1.0, 0.0
        %v315 = vsel %vm279, 1.0, 0.0
        %v316 = vsel %vm280, 1.0, 0.0
        %v317 = vsel %vm281, 1.0, 0.0
        %v318 = vsel %vm246, %v314, 0.0
        %v319 = vrot.slane %v318, 4
        %v320 = vadd.f32 %v318, %v319
        %v321 = vrot.slane %v320, 2
        %v322 = vadd.f32 %v320, %v321
        %v323 = vrot.slane %v322, 1
        %v324 = vadd.f32 %v322, %v323
        %v325 = vsel %vm246, %v315, 0.0
        %v326 = vrot.slane %v325, 4
        %v327 = vadd.f32 %v325, %v326
        %v328 = vrot.slane %v327, 2
        %v329 = vadd.f32 %v327, %v328
        %v330 = vrot.slane %v329, 1
        %v331 = vadd.f32 %v329, %v330
        %v332 = vsel %vm246, %v316, 0.0
        %v333 = vrot.slane %v332, 4
        %v334 = vadd.f32 %v332, %v333
        %v335 = vrot.slane %v334, 2
        %v336 = vadd.f32 %v334, %v335
        %v337 = vrot.slane %v336, 1
        %v338 = vadd.f32 %v336, %v337
        %v339 = vsel %vm246, %v317, 0.0
        %v340 = vrot.slane %v339, 4
        %v341 = vadd.f32 %v339, %v340
        %v342 = vrot.slane %v341, 2
        %v343 = vadd.f32 %v341, %v342
        %v344 = vrot.slane %v343, 1
        %v345 = vadd.f32 %v343, %v344
        %v346 = vsel %vm246, %v274, 0.0
        %v347 = vrot.slane %v346, 4
        %v348 = vadd.f32 %v346, %v347
        %v349 = vrot.slane %v348, 2
        %v350 = vadd.f32 %v348, %v349
        %v351 = vrot.slane %v350, 1
        %v352 = vadd.f32 %v350, %v351
        %v353 = vsel %vm246, %v275, 0.0
        %v354 = vrot.slane %v353, 4
        %v355 = vadd.f32 %v353, %v354
        %v356 = vrot.slane %v355, 2
        %v357 = vadd.f32 %v355, %v356
        %v358 = vrot.slane %v357, 1
        %v359 = vadd.f32 %v357, %v358
        %v360 = vsel %vm246, %v276, 0.0
        %v361 = vrot.slane %v360, 4
        %v362 = vadd.f32 %v360, %v361
        %v363 = vrot.slane %v362, 2
        %v364 = vadd.f32 %v362, %v363
        %v365 = vrot.slane %v364, 1
        %v366 = vadd.f32 %v364, %v365
        %v367 = vsel %vm246, %v277, 0.0
        %v368 = vrot.slane %v367, 4
        %v369 = vadd.f32 %v367, %v368
        %v370 = vrot.slane %v369, 2
        %v371 = vadd.f32 %v369, %v370
        %v372 = vrot.slane %v371, 1
        %v373 = vadd.f32 %v371, %v372
        %v374 = vld [vmem:[%s231] sm:$0xf]
        %vm379 = vcmask 1041409
        %v380 = vsel %vm379, %v299, %v292
        %vm381 = vcmask 1042434
        %v382 = vsel %vm381, %v306, %v380
        %vm383 = vcmask 1043459
        %v384 = vsel %vm383, %v313, %v382
        %v386 = vadd.f32 %v374, %v384
        %387 = vst [vmem:[%s231] sm:$0xf] %v386
        %s388 = scalar_lea.vmem %s231, 4 [#allocation7]
        %v389 = vld [vmem:[%s388] sm:$0xf]
        %v394 = vsel %vm379, %v359, %v352
        %v395 = vsel %vm381, %v366, %v394
        %v396 = vsel %vm383, %v373, %v395
        %v398 = vadd.f32 %v389, %v396
        %399 = vst [vmem:[%s388] sm:$0xf] %v398
        %s400 = scalar_lea.vmem %s231, 8 [#allocation7]
        %v401 = vld [vmem:[%s400] sm:$0xf]
        %v406 = vsel %vm379, %v331, %v324
        %v407 = vsel %vm381, %v338, %v406
        %v408 = vsel %vm383, %v345, %v407
        %v410 = vadd.f32 %v401, %v408
        %411 = vst [vmem:[%s400] sm:$0xf] %v410
        %s412 = sand.u32 %s111, 1
        %s413 = scalar_lea.sflag [#allocation4], %s412
        %s414 = sand.u32 %s111, 1
        %s415 = smul.addr %s414, 12
        %s416 = scalar_lea.vmem [#allocation7], %s415
        // Predicated region
        $region41: #{tpu_custom_call.1} parent=27 // pred_check
          %p417 = pneg %p121
        $region42: #{tpu_custom_call.1} parent=27 // pred_check_branch
          %419 = sbr.rel (%p417) target = $region44
        $region43: #{tpu_custom_call.1} parent=27 // pred_region
          %s421 = ssub.s32 192, 192
          %422 = vsyncadd %s413, %s421
          %s423 = smul.addr %s28, 3
          %s424 = smul.addr %s27, 3
          %s425 = sadd.s32 %s423, %s424
          %s426 = smul.addr %s425, 64
          %s427 = scalar_lea.hbm %s2, %s426
          %s428 = sshll.u32 %s416, 4
          %s429 = int_to_ptr.vmem [resolvable:$true] %s428
          %434 = dma.vmem_to_hbm [thread:$0]  %s429, 192, %s427, %s413, 64, 64, 4
        $region44: #{tpu_custom_call.1} parent=27 // pred_fallthru
          _
      $region28: #{tpu_custom_call.1} parent=5 // pred_fallthru
        _
      %p435 = scmp.le.s32.totalorder 2, %s17
      // Predicated region
      $region45: #{tpu_custom_call.1} parent=5 // pred_check
        %p436 = pneg %p435
      $region46: #{tpu_custom_call.1} parent=5 // pred_check_branch
        %438 = sbr.rel (%p436) target = $region48
      $region47: #{tpu_custom_call.1} parent=5 // pred_region
        %s439 = ssub.s32 %s17, 2
        // Predicated region
        $region49: #{tpu_custom_call.1} parent=47 // pred_check
          %p440 = pneg %p127
        $region50: #{tpu_custom_call.1} parent=47 // pred_check_branch
          %442 = sbr.rel (%p440) target = $region52
        $region51: #{tpu_custom_call.1} parent=47 // pred_region
          %s443 = sand.u32 %s112, 1
          %s444 = scalar_lea.sflag [#allocation4], %s443
          %s445 = sand.u32 %s112, 1
          %s446 = smul.addr %s445, 12
          %s447 = scalar_lea.vmem [#allocation7], %s446
          %448 = dma.done %s444, 192
        $region52: #{tpu_custom_call.1} parent=47 // pred_fallthru
          _
      $region48: #{tpu_custom_call.1} parent=5 // pred_fallthru
        _
    $region6: #{tpu_custom_call.1} parent=1 // loop_footer
      %s21 = sadd.s32 1, %s17
    $region7: #{tpu_custom_call.1} parent=1 // loop_footer_branch
      %16 = sbr.rel target = $region3
    $region8: #{tpu_custom_call.1} parent=1 // loop_exit
      _
    %449 = vsyncpa [#allocation3], 1
    %s450 = scalar_lea.sflag [#allocation3], 1
    %451 = vsyncpa %s450, 1
    %452 = vsyncpa [#allocation6], 1
    %s453 = scalar_lea.sflag [#allocation6], 1
    %454 = vsyncpa %s453, 1
    %455 = vsyncpa [#allocation4], 1
    %s456 = scalar_lea.sflag [#allocation4], 1
    %457 = vsyncpa %s456, 1

</llo_original>
